<compile_context>
chip_gen: v5e
topology: v5e:2x2
jax: 0.10.0
libtpu: 0.0.40
codegen_flags: <defaults>
</compile_context>

<pallas_src>
import functools

import jax
import jax.numpy as jnp
from jax import lax
from jax.experimental import pallas as pl
from jax.experimental.pallas import tpu as pltpu


def _dwconv_kernel(x_ref, w_ref, b_ref, o_ref, *, dw_step):
    """Depthwise 3x3 conv (padding=1) on one block.

    x_ref : (1, H, W, CT)  channel-tiled NHWC block          (dw_step == 1)
            (1, H, W*C)    folded layout, lane index = w*C+c (dw_step == C)
    w_ref : (3, 3, L)      per-lane taps, L = last dim of the x block
    b_ref : (1, L)         per-lane bias
    o_ref : same block shape as x_ref
    """
    f32 = jnp.float32
    s = dw_step
    x = x_ref[0].astype(f32)                      # (H, W, CT) or (H, W*C)

    # Horizontal taps: zero-padded shift of one spatial column (s lanes or
    # 1 sublane) along axis 1.  x_l[.., w, ..] == x[.., w-1, ..], etc., with
    # zeros at the image border (this *is* the padding=1 behaviour).
    zcol = jnp.zeros(x.shape[:1] + (s,) + x.shape[2:], f32)
    x_l = jnp.concatenate([zcol, x[:, :-s]], axis=1)
    x_r = jnp.concatenate([x[:, s:], zcol], axis=1)

    def wk(kh, kw):
        return w_ref[kh, kw, :].astype(f32)       # (L,) broadcasts over block

    # Combine the three horizontal taps once per kernel row (row reuse).
    top = x_l * wk(0, 0) + x * wk(0, 1) + x_r * wk(0, 2)   # feeds out row h+1
    mid = x_l * wk(1, 0) + x * wk(1, 1) + x_r * wk(1, 2)   # feeds out row h
    bot = x_l * wk(2, 0) + x * wk(2, 1) + x_r * wk(2, 2)   # feeds out row h-1

    # Vertical taps: shift along H (cheap major/sublane axis) with zero rows;
    # start the accumulator from the broadcast bias (no extra bias pass).
    zrow = jnp.zeros((1,) + x.shape[1:], f32)
    acc = mid + b_ref[0, :].astype(f32)
    acc = acc + jnp.concatenate([zrow, top[:-1]], axis=0)   # out[h] += top[h-1]
    acc = acc + jnp.concatenate([bot[1:], zrow], axis=0)    # out[h] += bot[h+1]

    o_ref[0] = acc.astype(o_ref.dtype)


def dwconv_pallas(x, weight, bias, H, W):
    """x: (B, N, C) with N == H*W; weight: (C, 3, 3) depthwise; bias: (C,).
    Returns (B, N, C), matching DWConv.forward(x, H, W) semantics."""
    B, N, C = x.shape
    assert N == H * W
    w_hwc = jnp.transpose(weight, (1, 2, 0))              # (3, 3, C)

    LANE = 128
    if C % LANE == 0:
        # Channel-tiled NHWC path: fully lane-dense, bounded per-step VMEM,
        # B * C/128 parallel grid steps.
        CT = LANE
        grid = (B, C // CT)
        kernel = functools.partial(_dwconv_kernel, dw_step=1)
        x_in = x.reshape(B, H, W, C)                      # free reshape
        w_in = w_hwc                                      # (3, 3, C)
        b_in = bias.reshape(1, C)
        in_specs = [
            pl.BlockSpec((1, H, W, CT), lambda b, c: (b, 0, 0, c)),
            pl.BlockSpec((3, 3, CT), lambda b, c: (0, 0, c)),
            pl.BlockSpec((1, CT), lambda b, c: (0, c)),
        ]
        out_specs = pl.BlockSpec((1, H, W, CT), lambda b, c: (b, 0, 0, c))
        out_shape = jax.ShapeDtypeStruct((B, H, W, C), x.dtype)
        dims = ("parallel", "parallel")
    else:
        # Small / ragged C: fold (w, c) onto the lane axis so loads/stores and
        # VPU work stay lane-dense (W*C lanes instead of C of 128).
        L = W * C
        grid = (B,)
        kernel = functools.partial(_dwconv_kernel, dw_step=C)
        x_in = x.reshape(B, H, L)                         # free reshape
        w_in = jnp.tile(w_hwc, (1, 1, W))                 # (3, 3, W*C): lane j -> c = j % C
        b_in = jnp.tile(bias, W).reshape(1, L)
        in_specs = [
            pl.BlockSpec((1, H, L), lambda b: (b, 0, 0)),
            pl.BlockSpec((3, 3, L), lambda b: (0, 0, 0)),
            pl.BlockSpec((1, L), lambda b: (0, 0)),
        ]
        out_specs = pl.BlockSpec((1, H, L), lambda b: (b, 0, 0))
        out_shape = jax.ShapeDtypeStruct((B, H, L), x.dtype)
        dims = ("parallel",)

    out = pl.pallas_call(
        kernel,
        out_shape=out_shape,
        grid_spec=pltpu.PrefetchScalarGridSpec(
            num_scalar_prefetch=0,
            grid=grid,
            in_specs=in_specs,
            out_specs=out_specs,
        ),
        compiler_params=pltpu.CompilerParams(dimension_semantics=dims),
    )(x_in, w_in, b_in)

    return out.reshape(B, N, C)


def dwconv_reference(x, weight, bias, H, W):
    """Pure-JAX reference mirroring the PyTorch NCHW depthwise conv."""
    B, N, C = x.shape
    x_nchw = jnp.transpose(x, (0, 2, 1)).reshape(B, C, H, W)
    y = lax.conv_general_dilated(
        x_nchw, weight[:, None, :, :],
        window_strides=(1, 1), padding=((1, 1), (1, 1)),
        dimension_numbers=("NCHW", "OIHW", "NCHW"),
        feature_group_count=C,
        precision=lax.Precision.HIGHEST)
    y = y + bias[None, :, None, None]
    return jnp.transpose(y.reshape(B, C, -1), (0, 2, 1))


def _run_case(key, B, C, H, W):
    kx, kw, kb = jax.random.split(key, 3)
    N = H * W
    x = jax.random.normal(kx, (B, N, C), dtype=jnp.float32)
    # nn.Conv2d(dim, dim, 3, groups=dim): weight (C,1,3,3) stored as (C,3,3); bias (C,)
    weight = jax.random.normal(kw, (C, 3, 3), dtype=jnp.float32) * 0.1
    bias = jax.random.normal(kb, (C,), dtype=jnp.float32) * 0.1

    out = jax.block_until_ready(dwconv_pallas(x, weight, bias, H, W))
    ref = jax.block_until_ready(dwconv_reference(x, weight, bias, H, W))

    assert out.shape == (B, N, C)
    assert jnp.allclose(out, ref, atol=1e-4, rtol=1e-4), ("mismatch", B, C, H, W)


if __name__ == "__main__":
    key = jax.random.PRNGKey(0)
    k1, k2 = jax.random.split(key)
    # Small-C smoke test (module's tiny shape): folded lane-dense layout.
    _run_case(k1, B=2, C=4, H=16, W=16)
    # C multiple of 128: channel-tiled NHWC layout (exercises the (B, C/128) grid).
    _run_case(k2, B=2, C=256, H=8, W=8)
    print("KERNEL_OK")
</pallas_src>

<mosaic_0001>
module attributes {stable_mosaic.version = 11 : i64} {
  func.func @_dwconv_kernel(%arg0: i32, %arg1: memref<1x16x64xf32, #tpu.memory_space<vmem>>, %arg2: memref<3x3x64xf32, #tpu.memory_space<vmem>>, %arg3: memref<1x64xf32, #tpu.memory_space<vmem>>, %arg4: memref<1x16x64xf32, #tpu.memory_space<vmem>>) attributes {dimension_semantics = [#tpu.dimension_semantics<parallel>], iteration_bounds = array<i64: 2>, scalar_prefetch = 0 : i64, scratch_operands = 0 : i64, tpu.core_type = #tpu.core_type<tc>, window_params = [{transform_indices = @transform_0, window_bounds = array<i64: 1, 16, 64>}, {pipeline_mode = #tpu.pipeline_mode<synchronous>, transform_indices = @transform_1, window_bounds = array<i64: 3, 3, 64>}, {pipeline_mode = #tpu.pipeline_mode<synchronous>, transform_indices = @transform_2, window_bounds = array<i64: 1, 64>}, {transform_indices = @transform_3, window_bounds = array<i64: 1, 16, 64>}]} {
    %c0 = arith.constant 0 : index
    %c0_0 = arith.constant 0 : index
    %c0_1 = arith.constant 0 : index
    %0 = vector.load %arg1[%c0, %c0_0, %c0_1] : memref<1x16x64xf32, #tpu.memory_space<vmem>>, vector<1x16x64xf32>
    %1 = vector.shape_cast %0 : vector<1x16x64xf32> to vector<16x64xf32>
    %cst = arith.constant 0.000000e+00 : f32
    %2 = vector.broadcast %cst : f32 to vector<16x4xf32>
    %3 = vector.extract_strided_slice %1 {offsets = [0, 0], sizes = [16, 60], strides = [1, 1]} : vector<16x64xf32> to vector<16x60xf32>
    %4 = tpu.concatenate %2, %3 in 1 : vector<16x4xf32>, vector<16x60xf32> -> vector<16x64xf32>
    %5 = vector.extract_strided_slice %1 {offsets = [0, 4], sizes = [16, 60], strides = [1, 1]} : vector<16x64xf32> to vector<16x60xf32>
    %6 = tpu.concatenate %5, %2 in 1 : vector<16x60xf32>, vector<16x4xf32> -> vector<16x64xf32>
    %c0_2 = arith.constant 0 : index
    %c0_3 = arith.constant 0 : index
    %c0_4 = arith.constant 0 : index
    %7 = vector.load %arg2[%c0_2, %c0_3, %c0_4] : memref<3x3x64xf32, #tpu.memory_space<vmem>>, vector<1x1x64xf32>
    %8 = vector.shape_cast %7 : vector<1x1x64xf32> to vector<64xf32>
    %9 = vector.shape_cast %8 : vector<64xf32> to vector<1x64xf32>
    %10 = vector.broadcast %9 : vector<1x64xf32> to vector<16x64xf32>
    %11 = arith.mulf %4, %10 : vector<16x64xf32>
    %c0_5 = arith.constant 0 : index
    %c1 = arith.constant 1 : index
    %c0_6 = arith.constant 0 : index
    %12 = vector.load %arg2[%c0_5, %c1, %c0_6] : memref<3x3x64xf32, #tpu.memory_space<vmem>>, vector<1x1x64xf32>
    %13 = vector.shape_cast %12 : vector<1x1x64xf32> to vector<64xf32>
    %14 = vector.shape_cast %13 : vector<64xf32> to vector<1x64xf32>
    %15 = vector.broadcast %14 : vector<1x64xf32> to vector<16x64xf32>
    %16 = arith.mulf %1, %15 : vector<16x64xf32>
    %17 = arith.addf %11, %16 : vector<16x64xf32>
    %c0_7 = arith.constant 0 : index
    %c2 = arith.constant 2 : index
    %c0_8 = arith.constant 0 : index
    %18 = vector.load %arg2[%c0_7, %c2, %c0_8] : memref<3x3x64xf32, #tpu.memory_space<vmem>>, vector<1x1x64xf32>
    %19 = vector.shape_cast %18 : vector<1x1x64xf32> to vector<64xf32>
    %20 = vector.shape_cast %19 : vector<64xf32> to vector<1x64xf32>
    %21 = vector.broadcast %20 : vector<1x64xf32> to vector<16x64xf32>
    %22 = arith.mulf %6, %21 : vector<16x64xf32>
    %23 = arith.addf %17, %22 : vector<16x64xf32>
    %c1_9 = arith.constant 1 : index
    %c0_10 = arith.constant 0 : index
    %c0_11 = arith.constant 0 : index
    %24 = vector.load %arg2[%c1_9, %c0_10, %c0_11] : memref<3x3x64xf32, #tpu.memory_space<vmem>>, vector<1x1x64xf32>
    %25 = vector.shape_cast %24 : vector<1x1x64xf32> to vector<64xf32>
    %26 = vector.shape_cast %25 : vector<64xf32> to vector<1x64xf32>
    %27 = vector.broadcast %26 : vector<1x64xf32> to vector<16x64xf32>
    %28 = arith.mulf %4, %27 : vector<16x64xf32>
    %c1_12 = arith.constant 1 : index
    %c1_13 = arith.constant 1 : index
    %c0_14 = arith.constant 0 : index
    %29 = vector.load %arg2[%c1_12, %c1_13, %c0_14] : memref<3x3x64xf32, #tpu.memory_space<vmem>>, vector<1x1x64xf32>
    %30 = vector.shape_cast %29 : vector<1x1x64xf32> to vector<64xf32>
    %31 = vector.shape_cast %30 : vector<64xf32> to vector<1x64xf32>
    %32 = vector.broadcast %31 : vector<1x64xf32> to vector<16x64xf32>
    %33 = arith.mulf %1, %32 : vector<16x64xf32>
    %34 = arith.addf %28, %33 : vector<16x64xf32>
    %c1_15 = arith.constant 1 : index
    %c2_16 = arith.constant 2 : index
    %c0_17 = arith.constant 0 : index
    %35 = vector.load %arg2[%c1_15, %c2_16, %c0_17] : memref<3x3x64xf32, #tpu.memory_space<vmem>>, vector<1x1x64xf32>
    %36 = vector.shape_cast %35 : vector<1x1x64xf32> to vector<64xf32>
    %37 = vector.shape_cast %36 : vector<64xf32> to vector<1x64xf32>
    %38 = vector.broadcast %37 : vector<1x64xf32> to vector<16x64xf32>
    %39 = arith.mulf %6, %38 : vector<16x64xf32>
    %40 = arith.addf %34, %39 : vector<16x64xf32>
    %c2_18 = arith.constant 2 : index
    %c0_19 = arith.constant 0 : index
    %c0_20 = arith.constant 0 : index
    %41 = vector.load %arg2[%c2_18, %c0_19, %c0_20] : memref<3x3x64xf32, #tpu.memory_space<vmem>>, vector<1x1x64xf32>
    %42 = vector.shape_cast %41 : vector<1x1x64xf32> to vector<64xf32>
    %43 = vector.shape_cast %42 : vector<64xf32> to vector<1x64xf32>
    %44 = vector.broadcast %43 : vector<1x64xf32> to vector<16x64xf32>
    %45 = arith.mulf %4, %44 : vector<16x64xf32>
    %c2_21 = arith.constant 2 : index
    %c1_22 = arith.constant 1 : index
    %c0_23 = arith.constant 0 : index
    %46 = vector.load %arg2[%c2_21, %c1_22, %c0_23] : memref<3x3x64xf32, #tpu.memory_space<vmem>>, vector<1x1x64xf32>
    %47 = vector.shape_cast %46 : vector<1x1x64xf32> to vector<64xf32>
    %48 = vector.shape_cast %47 : vector<64xf32> to vector<1x64xf32>
    %49 = vector.broadcast %48 : vector<1x64xf32> to vector<16x64xf32>
    %50 = arith.mulf %1, %49 : vector<16x64xf32>
    %51 = arith.addf %45, %50 : vector<16x64xf32>
    %c2_24 = arith.constant 2 : index
    %c2_25 = arith.constant 2 : index
    %c0_26 = arith.constant 0 : index
    %52 = vector.load %arg2[%c2_24, %c2_25, %c0_26] : memref<3x3x64xf32, #tpu.memory_space<vmem>>, vector<1x1x64xf32>
    %53 = vector.shape_cast %52 : vector<1x1x64xf32> to vector<64xf32>
    %54 = vector.shape_cast %53 : vector<64xf32> to vector<1x64xf32>
    %55 = vector.broadcast %54 : vector<1x64xf32> to vector<16x64xf32>
    %56 = arith.mulf %6, %55 : vector<16x64xf32>
    %57 = arith.addf %51, %56 : vector<16x64xf32>
    %cst_27 = arith.constant 0.000000e+00 : f32
    %58 = vector.broadcast %cst_27 : f32 to vector<1x64xf32>
    %c0_28 = arith.constant 0 : index
    %c0_29 = arith.constant 0 : index
    %59 = vector.load %arg3[%c0_28, %c0_29] : memref<1x64xf32, #tpu.memory_space<vmem>>, vector<1x64xf32>
    %60 = vector.shape_cast %59 : vector<1x64xf32> to vector<64xf32>
    %61 = vector.shape_cast %60 : vector<64xf32> to vector<1x64xf32>
    %62 = vector.broadcast %61 : vector<1x64xf32> to vector<16x64xf32>
    %63 = arith.addf %40, %62 : vector<16x64xf32>
    %64 = vector.extract_strided_slice %23 {offsets = [0, 0], sizes = [15, 64], strides = [1, 1]} : vector<16x64xf32> to vector<15x64xf32>
    %65 = tpu.concatenate %58, %64 in 0 : vector<1x64xf32>, vector<15x64xf32> -> vector<16x64xf32>
    %66 = arith.addf %63, %65 : vector<16x64xf32>
    %67 = vector.extract_strided_slice %57 {offsets = [1, 0], sizes = [15, 64], strides = [1, 1]} : vector<16x64xf32> to vector<15x64xf32>
    %68 = tpu.concatenate %67, %58 in 0 : vector<15x64xf32>, vector<1x64xf32> -> vector<16x64xf32>
    %69 = arith.addf %66, %68 : vector<16x64xf32>
    %c0_30 = arith.constant 0 : index
    %c0_31 = arith.constant 0 : index
    %c0_32 = arith.constant 0 : index
    %70 = vector.load %arg4[%c0_30, %c0_31, %c0_32] : memref<1x16x64xf32, #tpu.memory_space<vmem>>, vector<1x16x64xf32>
    %71 = vector.shape_cast %70 : vector<1x16x64xf32> to vector<16x64xf32>
    %72 = vector.shape_cast %69 : vector<16x64xf32> to vector<1x16x64xf32>
    tpu.vector_store %arg4[%c0_30, %c0_31, %c0_32], %72 {strides = array<i32>} : memref<1x16x64xf32, #tpu.memory_space<vmem>>, vector<1x16x64xf32>,
    return
  }
  func.func @transform_0(%arg0: i32) -> (i32, i32, i32) {
    %c0_i32 = arith.constant 0 : i32
    %c0_i32_0 = arith.constant 0 : i32
    %c0_i32_1 = arith.constant 0 : i32
    return %arg0, %c0_i32, %c0_i32_0 : i32, i32, i32
  }
  func.func @transform_1(%arg0: i32) -> (i32, i32, i32) {
    %c0_i32 = arith.constant 0 : i32
    %c0_i32_0 = arith.constant 0 : i32
    %c0_i32_1 = arith.constant 0 : i32
    %c0_i32_2 = arith.constant 0 : i32
    return %c0_i32, %c0_i32_0, %c0_i32_1 : i32, i32, i32
  }
  func.func @transform_2(%arg0: i32) -> (i32, i32) {
    %c0_i32 = arith.constant 0 : i32
    %c0_i32_0 = arith.constant 0 : i32
    %c0_i32_1 = arith.constant 0 : i32
    return %c0_i32, %c0_i32_0 : i32, i32
  }
  func.func @transform_3(%arg0: i32) -> (i32, i32, i32) {
    %c0_i32 = arith.constant 0 : i32
    %c0_i32_0 = arith.constant 0 : i32
    %c0_i32_1 = arith.constant 0 : i32
    return %arg0, %c0_i32, %c0_i32_0 : i32, i32, i32
  }
}

</mosaic_0001>

<llo_original>
// kernel: tpu_custom_call.1
$region0: #{tpu_custom_call.1}
  #allocation0 [shape = 'u32[]', space=smem, size = 0x4, offset = 0x4, fixed_abs, tag = 'smem constant byte address 0x4 - core index']
  #allocation1 [shape = 'u32[72,128]{1,0:T(1,128)}', space=vmem, size = 0x9000, scoped, tag = 'internal scratch']
  %s0 = inlined_call_operand.hbm [shape: f32[2,16,64], index: 0, kind: input, shape index: {}]
  %s1 = inlined_call_operand.hbm [shape: f32[3,3,64], index: 1, kind: input, shape index: {}]
  %s2 = inlined_call_operand.vmem [shape: f32[1,64], index: 2, kind: input, shape index: {}]
  %s3 = inlined_call_operand.hbm [shape: f32[2,16,64], index: 3, kind: output, shape index: {}]
  %s4 = sld [smem:[#allocation0]]
  $region53: #{tpu_custom_call.1} parent=0
    _
  %s6 = ssub.s32 1, %s4
  %s7 = scalar_select 0, %s6, %s4
  $region1: #{tpu_custom_call.1} parent=0
    #allocation2 [shape = 'u8[16384]{0}', space=vmem, size = 0x4000, scoped, tag = 'input window, operand 0']
    #allocation3 [shape = 's32[2]{0}', space=sflag, size = 0x8, scoped, tag = 'scoped memory for tpu_custom_call.1']
    #allocation4 [shape = 's32[2]{0}', space=sflag, size = 0x8, scoped, tag = 'scoped memory for tpu_custom_call.1']
    #allocation5 [shape = 'u8[6144]{0}', space=vmem, size = 0x1800, scoped, tag = 'input window, operand 1, single buffered']
    #allocation6 [shape = 's32[1]{0}', space=sflag, size = 0x4, scoped, tag = 'scoped memory for tpu_custom_call.1']
    #allocation7 [shape = 'u8[16384]{0}', space=vmem, size = 0x4000, scoped, tag = 'output window, operand 0']
    %8 = vsyncpa [#allocation3], 0
    %s9 = scalar_lea.sflag [#allocation3], 1
    %10 = vsyncpa %s9, 0
    %11 = vsyncpa [#allocation6], 0
    %12 = vsyncpa [#allocation4], 0
    %s13 = scalar_lea.sflag [#allocation4], 1
    %14 = vsyncpa %s13, 0
    loop: start=0, step=1, limit=4
    $region2: #{tpu_custom_call.1} parent=1 // loop_pre_header
      _
    $region3: #{tpu_custom_call.1} parent=1 // loop_header
      %s16 = sphi 0, %s20
      %p17 = scmp.ge.s32.totalorder %s16, 4
      %s26 = sphi 0, %s28
      %s29 = sphi 0, %s26
      %s30 = sphi 0, %s29
      %s46 = sphi 0, %s30
      %s50 = sphi 0, %s50
      %s52 = sphi 0, %s50
      %s53 = sphi 0, %s52
      %s67 = sphi 0, %s53
      %s71 = sphi 0, %s71
      %s73 = sphi 0, %s71
      %s74 = sphi 0, %s73
      %s88 = sphi 0, %s74
      %s94 = sphi 0, %s96
      %s97 = sphi 0, %s94
      %s98 = sphi 0, %s97
      %s114 = sphi 0, %s98
    $region4: #{tpu_custom_call.1} parent=1 // loop_header_branch
      %19 = sbr.rel (%p17) target = $region8
    $region5: #{tpu_custom_call.1} parent=1 // loop_body
      %s21 = ssub.s32 %s16, 1
      %s22 = ssub.s32 %s16, 2
      %s23 = sadd.s32 %s16, 1
      %s24 = ssub.s32 %s16, %s23
      %p25 = scmp.eq.s32.totalorder %s24, 0
      %s27 = sadd.s32 %s26, 1
      %s28 = scalar_select %p25, %s26, %s27
      %p31 = pneg %p25
      %p32 = scmp.eq.s32.totalorder %s16, 1
      %p33 = por %p31, %p32
      %p34 = scmp.ne.s32.totalorder %s26, %s29
      %p35 = scmp.eq.s32.totalorder %s16, 0
      %p36 = por %p34, %p35
      %p37 = scmp.ne.s32.totalorder %s26, %s29
      %p38 = scmp.eq.s32.totalorder %s21, 1
      %p39 = por %p37, %p38
      %p40 = scmp.ne.s32.totalorder %s29, %s30
      %p41 = scmp.eq.s32.totalorder %s21, 0
      %p42 = por %p40, %p41
      %p43 = scmp.ne.s32.totalorder %s29, %s30
      %p44 = scmp.eq.s32.totalorder %s22, 1
      %p45 = por %p43, %p44
      %p47 = scmp.ne.s32.totalorder %s30, %s46
      %p48 = scmp.eq.s32.totalorder %s22, 0
      %p49 = por %p47, %p48
      %s51 = sadd.s32 %s50, 1
      %p54 = scmp.eq.s32.totalorder %s16, 1
      %p55 = scmp.ne.s32.totalorder %s50, %s52
      %p56 = scmp.eq.s32.totalorder %s16, 0
      %p57 = por %p55, %p56
      %p58 = scmp.ne.s32.totalorder %s50, %s52
      %p59 = scmp.eq.s32.totalorder %s21, 1
      %p60 = por %p58, %p59
      %p61 = scmp.ne.s32.totalorder %s52, %s53
      %p62 = scmp.eq.s32.totalorder %s21, 0
      %p63 = por %p61, %p62
      %p64 = scmp.ne.s32.totalorder %s52, %s53
      %p65 = scmp.eq.s32.totalorder %s22, 1
      %p66 = por %p64, %p65
      %p68 = scmp.ne.s32.totalorder %s53, %s67
      %p69 = scmp.eq.s32.totalorder %s22, 0
      %p70 = por %p68, %p69
      %s72 = sadd.s32 %s71, 1
      %p75 = scmp.eq.s32.totalorder %s16, 1
      %p76 = scmp.ne.s32.totalorder %s71, %s73
      %p77 = scmp.eq.s32.totalorder %s16, 0
      %p78 = por %p76, %p77
      %p79 = scmp.ne.s32.totalorder %s71, %s73
      %p80 = scmp.eq.s32.totalorder %s21, 1
      %p81 = por %p79, %p80
      %p82 = scmp.ne.s32.totalorder %s73, %s74
      %p83 = scmp.eq.s32.totalorder %s21, 0
      %p84 = por %p82, %p83
      %p85 = scmp.ne.s32.totalorder %s73, %s74
      %p86 = scmp.eq.s32.totalorder %s22, 1
      %p87 = por %p85, %p86
      %p89 = scmp.ne.s32.totalorder %s74, %s88
      %p90 = scmp.eq.s32.totalorder %s22, 0
      %p91 = por %p89, %p90
      %s92 = ssub.s32 %s16, %s23
      %p93 = scmp.eq.s32.totalorder %s92, 0
      %s95 = sadd.s32 %s94, 1
      %s96 = scalar_select %p93, %s94, %s95
      %p99 = pneg %p93
      %p100 = scmp.eq.s32.totalorder %s16, 1
      %p101 = por %p99, %p100
      %p102 = scmp.ne.s32.totalorder %s94, %s97
      %p103 = scmp.eq.s32.totalorder %s16, 0
      %p104 = por %p102, %p103
      %p105 = scmp.ne.s32.totalorder %s94, %s97
      %p106 = scmp.eq.s32.totalorder %s21, 1
      %p107 = por %p105, %p106
      %p108 = scmp.ne.s32.totalorder %s97, %s98
      %p109 = scmp.eq.s32.totalorder %s21, 0
      %p110 = por %p108, %p109
      %p111 = scmp.ne.s32.totalorder %s97, %s98
      %p112 = scmp.eq.s32.totalorder %s22, 1
      %p113 = por %p111, %p112
      %p115 = scmp.ne.s32.totalorder %s98, %s114
      %p116 = scmp.eq.s32.totalorder %s22, 0
      %p117 = por %p115, %p116
      %p118 = scmp.le.s32.totalorder 1, %s16
      %p119 = scmp.lt.s32.totalorder %s16, 3
      %p120 = pnand %p118, %p119
      %p121 = pneg %p120
      // Predicated region
      $region9: #{tpu_custom_call.1} parent=5 // pred_check
        _
      $region10: #{tpu_custom_call.1} parent=5 // pred_check_branch
        %123 = sbr.rel (%p120) target = $region12
      $region11: #{tpu_custom_call.1} parent=5 // pred_region
        %s124 = ssub.s32 %s16, 1
        // Predicated region
        $region13: #{tpu_custom_call.1} parent=11 // pred_check
          %p125 = pneg %p63
        $region14: #{tpu_custom_call.1} parent=11 // pred_check_branch
          %127 = sbr.rel (%p125) target = $region16
        $region15: #{tpu_custom_call.1} parent=11 // pred_region
          %129 = vsyncadd [#allocation6], 0
          %s130 = sshll.u32 %s1, 4
          %s131 = int_to_ptr.hbm [resolvable:$true] %s130
          %s132 = sshll.u32 [#allocation5], 4
          %s133 = int_to_ptr.vmem [resolvable:$true] %s132
          %138 = dma.hbm_to_vmem [thread:$0]  %s131, 192, %s133, [#allocation6], 64, 64, 4
        $region16: #{tpu_custom_call.1} parent=11 // pred_fallthru
          _
        // Predicated region
        $region17: #{tpu_custom_call.1} parent=11 // pred_check
          %p139 = pneg %p84
        $region18: #{tpu_custom_call.1} parent=11 // pred_check_branch
          %141 = sbr.rel (%p139) target = $region20
        $region19: #{tpu_custom_call.1} parent=11 // pred_region
          _
        $region20: #{tpu_custom_call.1} parent=11 // pred_fallthru
          _
      $region12: #{tpu_custom_call.1} parent=5 // pred_fallthru
        _
      %p142 = scmp.lt.s32.totalorder %s16, 2
      // Predicated region
      $region21: #{tpu_custom_call.1} parent=5 // pred_check
        %p143 = pneg %p142
      $region22: #{tpu_custom_call.1} parent=5 // pred_check_branch
        %145 = sbr.rel (%p143) target = $region24
      $region23: #{tpu_custom_call.1} parent=5 // pred_region
        // Predicated region
        $region25: #{tpu_custom_call.1} parent=23 // pred_check
          %p146 = pneg %p36
        $region26: #{tpu_custom_call.1} parent=23 // pred_check_branch
          %148 = sbr.rel (%p146) target = $region28
        $region27: #{tpu_custom_call.1} parent=23 // pred_region
          %s149 = sand.u32 %s26, 1
          %s150 = scalar_lea.sflag [#allocation3], %s149
          %s151 = sand.u32 %s26, 1
          %s152 = smul.addr %s151, 16
          %s153 = scalar_lea.vmem [#allocation2], %s152
          %155 = vsyncadd %s150, 0
          %s156 = smul.addr %s16, 2
          %s157 = smul.addr %s156, 8
          %s158 = scalar_lea.hbm %s0, %s157
          %s159 = sshll.u32 %s158, 4
          %s160 = int_to_ptr.hbm [resolvable:$true] %s159
          %s161 = sshll.u32 %s153, 4
          %s162 = int_to_ptr.vmem [resolvable:$true] %s161
          %167 = dma.hbm_to_vmem [thread:$0]  %s160, 256, %s162, %s150, 128, 128, 8
        $region28: #{tpu_custom_call.1} parent=23 // pred_fallthru
          _
      $region24: #{tpu_custom_call.1} parent=5 // pred_fallthru
        _
      %p168 = scmp.le.s32.totalorder 1, %s16
      %p169 = scmp.lt.s32.totalorder %s16, 3
      %p170 = pnand %p168, %p169
      %p171 = pneg %p170
      // Predicated region
      $region29: #{tpu_custom_call.1} parent=5 // pred_check
        _
      $region30: #{tpu_custom_call.1} parent=5 // pred_check_branch
        %173 = sbr.rel (%p170) target = $region32
      $region31: #{tpu_custom_call.1} parent=5 // pred_region
        %s174 = ssub.s32 %s16, 1
        %s175 = sand.u32 %s29, 1
        %s176 = scalar_lea.sflag [#allocation3], %s175
        %s177 = sand.u32 %s29, 1
        %s178 = smul.addr %s177, 16
        %s179 = scalar_lea.vmem [#allocation2], %s178
        // Predicated region
        $region33: #{tpu_custom_call.1} parent=31 // pred_check
          %p180 = pneg %p42
        $region34: #{tpu_custom_call.1} parent=31 // pred_check_branch
          %182 = sbr.rel (%p180) target = $region36
        $region35: #{tpu_custom_call.1} parent=31 // pred_region
          %184 = dma.done %s176, 256
        $region36: #{tpu_custom_call.1} parent=31 // pred_fallthru
          _
        // Predicated region
        $region37: #{tpu_custom_call.1} parent=31 // pred_check
          %p185 = pneg %p63
        $region38: #{tpu_custom_call.1} parent=31 // pred_check_branch
          %187 = sbr.rel (%p185) target = $region40
        $region39: #{tpu_custom_call.1} parent=31 // pred_region
          %189 = dma.done [#allocation6], 192
        $region40: #{tpu_custom_call.1} parent=31 // pred_fallthru
          _
        %s190 = sand.u32 %s29, 1
        %s191 = scalar_lea.sflag [#allocation3], %s190
        %s192 = sand.u32 %s29, 1
        %s193 = smul.addr %s192, 16
        %s194 = scalar_lea.vmem [#allocation2], %s193
        %p195 = pneg %p42
        %p196 = pneg %p39
        %p197 = pneg %p63
        %p198 = pneg %p60
        %p199 = pneg %p84
        %p200 = pneg %p81
        %p201 = pneg %p110
        %p202 = pneg %p107
        %s203 = sand.u32 %s97, 1
        %s204 = scalar_lea.sflag [#allocation4], %s203
        %s205 = sand.u32 %s97, 1
        %s206 = smul.addr %s205, 16
        %s207 = scalar_lea.vmem [#allocation7], %s206
        %v208 = vld [vmem:[%s179] sm:$0xff]
        %v209 = vld [vmem:[%s179 + $0x8] sm:$0xff]
        %212 = vrot.lane.b32.xlu0 %v208, 4
        %v213 = vpop.permute.xlu0 %212
        %214 = vrot.lane.b32.xlu0 %v209, 4
        %v215 = vpop.permute.xlu0 %214
        %vm218 = vcmask 31744
        %v219 = vsel %vm218, 0.0, %v213
        %v220 = vsel %vm218, 0.0, %v215
        %221 = vrot.lane.b32.xlu0 %v208, 124
        %v222 = vpop.permute.xlu0 %221
        %223 = vrot.lane.b32.xlu0 %v209, 124
        %v224 = vpop.permute.xlu0 %223
        %vm227 = vcmask 490496
        %v228 = vsel %vm227, %v222, 0.0
        %v229 = vsel %vm227, %v224, 0.0
        %v230 = vld [vmem:[#allocation5] sm:$0x1]
        %v231 = vperm.slane %v230, 0
        %v232 = vmul.f32 %v219, %v231
        %v233 = vmul.f32 %v220, %v231
        %v234 = vld [vmem:[#allocation5 + $0x1] sm:$0x1]
        %v235 = vperm.slane %v234, 0
        %v236 = vmul.f32 %v208, %v235
        %v237 = vmul.f32 %v209, %v235
        %v238 = vadd.f32 %v232, %v236
        %v239 = vadd.f32 %v233, %v237
        %v240 = vld [vmem:[#allocation5 + $0x2] sm:$0x1]
        %v241 = vperm.slane %v240, 0
        %v242 = vmul.f32 %v228, %v241
        %v243 = vmul.f32 %v229, %v241
        %v244 = vadd.f32 %v238, %v242
        %v245 = vadd.f32 %v239, %v243
        %s246 = scalar_lea.vmem [#allocation5], 4
        %v247 = vld [vmem:[%s246] sm:$0x1]
        %v248 = vperm.slane %v247, 0
        %v249 = vmul.f32 %v219, %v248
        %v250 = vmul.f32 %v220, %v248
        %v251 = vld [vmem:[%s246 + $0x1] sm:$0x1]
        %v252 = vperm.slane %v251, 0
        %v253 = vmul.f32 %v208, %v252
        %v254 = vmul.f32 %v209, %v252
        %v255 = vadd.f32 %v249, %v253
        %v256 = vadd.f32 %v250, %v254
        %v257 = vld [vmem:[%s246 + $0x2] sm:$0x1]
        %v258 = vperm.slane %v257, 0
        %v259 = vmul.f32 %v228, %v258
        %v260 = vmul.f32 %v229, %v258
        %v261 = vadd.f32 %v255, %v259
        %v262 = vadd.f32 %v256, %v260
        %s263 = scalar_lea.vmem [#allocation5], 8
        %v264 = vld [vmem:[%s263] sm:$0x1]
        %v265 = vperm.slane %v264, 0
        %v266 = vmul.f32 %v219, %v265
        %v267 = vmul.f32 %v220, %v265
        %v268 = vld [vmem:[%s263 + $0x1] sm:$0x1]
        %v269 = vperm.slane %v268, 0
        %v270 = vmul.f32 %v208, %v269
        %v271 = vmul.f32 %v209, %v269
        %v272 = vadd.f32 %v266, %v270
        %v273 = vadd.f32 %v267, %v271
        %v274 = vld [vmem:[%s263 + $0x2] sm:$0x1]
        %v275 = vperm.slane %v274, 0
        %v276 = vmul.f32 %v228, %v275
        %v277 = vmul.f32 %v229, %v275
        %v278 = vadd.f32 %v272, %v276
        %v279 = vadd.f32 %v273, %v277
        %v280 = vld [vmem:[%s2] sm:$0x1]
        %v282 = vperm.slane %v280, 0
        %v284 = vadd.f32 %v261, %v282
        %v285 = vadd.f32 %v262, %v282
        %vm288 = vcmask 1040384
        %v289 = vrot.slane %v244, 7
        %v290 = vrot.slane %v245, 7
        %v291 = vsel %vm288, %v289, %v290
        %v294 = vsel %vm288, 0.0, %v289
        %v295 = vadd.f32 %v284, %v294
        %v296 = vadd.f32 %v285, %v291
        %vm299 = vcmask 1046528
        %v300 = vrot.slane %v278, 1
        %v301 = vrot.slane %v279, 1
        %v302 = vsel %vm299, %v300, %v301
        %v305 = vsel %vm299, %v301, 0.0
        %v306 = vadd.f32 %v295, %v302
        %v307 = vadd.f32 %v296, %v305
        %vm308 = vcmask 523264
        %309 = vst.msk [vmem:[%s207] sm:$0xff] %vm308, %v306
        %310 = vst.msk [vmem:[%s207 + $0x8] sm:$0xff] %vm308, %v307
        %s311 = sand.u32 %s97, 1
        %s312 = scalar_lea.sflag [#allocation4], %s311
        %s313 = sand.u32 %s97, 1
        %s314 = smul.addr %s313, 16
        %s315 = scalar_lea.vmem [#allocation7], %s314
        // Predicated region
        $region41: #{tpu_custom_call.1} parent=31 // pred_check
          %p316 = pneg %p107
        $region42: #{tpu_custom_call.1} parent=31 // pred_check_branch
          %318 = sbr.rel (%p316) target = $region44
        $region43: #{tpu_custom_call.1} parent=31 // pred_region
          %320 = vsyncadd %s312, 0
          %s321 = smul.addr %s21, 2
          %s322 = smul.addr %s321, 8
          %s323 = scalar_lea.hbm %s3, %s322
          %s324 = sshll.u32 %s315, 4
          %s325 = int_to_ptr.vmem [resolvable:$true] %s324
          %s326 = sshll.u32 %s323, 4
          %s327 = int_to_ptr.hbm [resolvable:$true] %s326
          %332 = dma.vmem_to_hbm [thread:$0]  %s325, 256, %s327, %s312, 128, 128, 8
        $region44: #{tpu_custom_call.1} parent=31 // pred_fallthru
          _
      $region32: #{tpu_custom_call.1} parent=5 // pred_fallthru
        _
      %p333 = scmp.le.s32.totalorder 2, %s16
      // Predicated region
      $region45: #{tpu_custom_call.1} parent=5 // pred_check
        %p334 = pneg %p333
      $region46: #{tpu_custom_call.1} parent=5 // pred_check_branch
        %336 = sbr.rel (%p334) target = $region48
      $region47: #{tpu_custom_call.1} parent=5 // pred_region
        %s337 = ssub.s32 %s16, 2
        // Predicated region
        $region49: #{tpu_custom_call.1} parent=47 // pred_check
          %p338 = pneg %p113
        $region50: #{tpu_custom_call.1} parent=47 // pred_check_branch
          %340 = sbr.rel (%p338) target = $region52
        $region51: #{tpu_custom_call.1} parent=47 // pred_region
          %s341 = sand.u32 %s98, 1
          %s342 = scalar_lea.sflag [#allocation4], %s341
          %s343 = sand.u32 %s98, 1
          %s344 = smul.addr %s343, 16
          %s345 = scalar_lea.vmem [#allocation7], %s344
          %347 = dma.done %s342, 256
        $region52: #{tpu_custom_call.1} parent=47 // pred_fallthru
          _
      $region48: #{tpu_custom_call.1} parent=5 // pred_fallthru
        _
    $region6: #{tpu_custom_call.1} parent=1 // loop_footer
      %s20 = sadd.s32 1, %s16
    $region7: #{tpu_custom_call.1} parent=1 // loop_footer_branch
      %15 = sbr.rel target = $region3
    $region8: #{tpu_custom_call.1} parent=1 // loop_exit
      _
    %348 = vsyncpa [#allocation3], 1
    %s349 = scalar_lea.sflag [#allocation3], 1
    %350 = vsyncpa %s349, 1
    %351 = vsyncpa [#allocation6], 1
    %352 = vsyncpa [#allocation4], 1
    %s353 = scalar_lea.sflag [#allocation4], 1
    %354 = vsyncpa %s353, 1

</llo_original>
